<compile_context>
chip_gen: v7x
topology: tpu7x:2x2x1
jax: 0.10.0
libtpu: 0.0.40
codegen_flags: <defaults>
</compile_context>

<pallas_src>
import functools

import jax
import jax.numpy as jnp
from jax.experimental import pallas as pl
from jax.experimental.pallas import tpu as pltpu


def _ceil_to(x, m):
    return -(-x // m) * m


def _choose_tiling(n, row_bytes, budget_bytes=4 << 20, partitions=2):
    """Pick (tn, n_pad, num_partitions, tiles_per_partition) for the row axis.

    tn is a multiple of 32 when the budget allows (keeps bf16/int8/fp8 inputs
    sublane-pack aligned), otherwise a multiple of 8.  n is padded with zero
    rows (zero rows contribute exactly 0 to both TV sums) so every tile is
    full and tiles split evenly across `partitions` parallel grid slices.

    The per-tile budget is kept at ~4 MiB on all generations: the in-kernel
    f32 cast / roll / diff temporaries scale with the tile and must fit next
    to the double-buffered input inside the 32 MiB scoped-VMEM limit shared
    by v5e/v6e/v7x.
    """
    gran = 32 if budget_bytes >= 32 * row_bytes else 8
    max_rows = max(gran, (budget_bytes // row_bytes) // gran * gran)
    per_part = _ceil_to(max(1, -(-n // partitions)), gran)
    tn = int(min(max_rows, per_part))
    num_tiles = -(-n // tn)
    if num_tiles > 1:
        num_parts = partitions
        num_tiles = _ceil_to(num_tiles, num_parts)
    else:
        num_parts = 1
    return tn, num_tiles * tn, num_parts, num_tiles // num_parts


def _tv_loss_kernel(x_ref, o_ref, acc_h_ref, acc_w_ref, *, row_stride, h, w,
                    inv_count_h, inv_count_w, inv_batch_weight):
    """Processes one (tn, hw_pad) row-tile of the flattened (B*C, H*W) input.

    x_ref     : (tn, hw_pad)  input row tile (native dtype, cast per tile)
    o_ref     : (1, 1) f32    per-partition partial loss in SMEM
    acc_h_ref : (8, hw_pad)   f32 VMEM accumulator for un-scaled dh^2
    acc_w_ref : (8, hw_pad)   f32 VMEM accumulator for un-scaled dw^2
    """
    step = pl.program_id(1)

    @pl.when(step == 0)
    def _init():
        acc_h_ref[...] = jnp.zeros_like(acc_h_ref)
        acc_w_ref[...] = jnp.zeros_like(acc_w_ref)

    x = x_ref[...].astype(jnp.float32)    # per-tile cast, not whole-array
    tn, hw_pad = x.shape

    # Neighbor one image-row below -> flat lane offset +row_stride (== W)
    # Neighbor one column right    -> flat lane offset +1
    # roll(x, hw_pad - s) == jnp.roll(x, -s): out[f] = x[(f + s) mod hw_pad].
    # XLU lane rotation: no boundary-crossing slice copies are materialized.
    x_down = pltpu.roll(x, shift=hw_pad - row_stride, axis=1)
    x_right = pltpu.roll(x, shift=hw_pad - 1, axis=1)

    dh = x_down - x
    dw = x_right - x

    # Un-scaled squared diffs, reduced over the row (sublane-group) axis into
    # small (8, hw_pad) accumulators — pure VPU adds, 1/8 of the acc traffic.
    # Lane positions are preserved, so the boundary masks can be applied once
    # in the finalize step instead of per element per step.
    acc_h_ref[...] += (dh * dh).reshape(tn // 8, 8, hw_pad).sum(axis=0)
    acc_w_ref[...] += (dw * dw).reshape(tn // 8, 8, hw_pad).sum(axis=0)

    @pl.when(step == pl.num_programs(1) - 1)
    def _finalize():
        # Boundary masks + normalization applied exactly once, off the hot
        # loop.  Wrap-around lanes (image-bottom rows, last columns, lane
        # padding beyond H*W) are zeroed here.
        lane = jax.lax.broadcasted_iota(jnp.int32, acc_h_ref.shape, 1)
        mask_h = (lane < (h - 1) * w).astype(jnp.float32)
        mask_w = jnp.logical_and(lane % w < (w - 1),
                                 lane < h * w).astype(jnp.float32)
        h_tv = jnp.sum(acc_h_ref[...] * mask_h)
        w_tv = jnp.sum(acc_w_ref[...] * mask_w)
        # If H==1 or W==1 the corresponding inv_count is NaN and the masked
        # sum is 0, so 0 * NaN = NaN — same as PyTorch's 0.0 / 0 division.
        o_ref[0, 0] = inv_batch_weight * (h_tv * inv_count_h +
                                          w_tv * inv_count_w)


def tv_loss(x, weight: float = 1.0):
    """TV loss matching PyTorch TVLoss.forward. x: (B, C, H, W) -> f32 scalar."""
    b, c, h, w = x.shape
    n = b * c
    hw = h * w

    count_h = c * (h - 1) * w
    count_w = c * h * (w - 1)
    inv_count_h = (1.0 / count_h) if count_h else float("nan")
    inv_count_w = (1.0 / count_w) if count_w else float("nan")

    # Lane-dense layout: fold (H, W) into one flat last dim, padded to a
    # multiple of 128 so the lane rolls / stores stay vreg-aligned.
    hw_pad = _ceil_to(hw, 128)
    x2 = x.reshape(n, hw)

    itemsize = int(jnp.dtype(x.dtype).itemsize)
    tn, n_pad, num_parts, tiles_per_part = _choose_tiling(n, hw_pad * itemsize)

    if (n_pad, hw_pad) != (n, hw):
        # Zero padding contributes exactly 0 to both (masked) TV sums.
        x2 = jnp.pad(x2, ((0, n_pad - n), (0, hw_pad - hw)))

    kernel = functools.partial(
        _tv_loss_kernel,
        row_stride=w, h=h, w=w,
        inv_count_h=inv_count_h, inv_count_w=inv_count_w,
        inv_batch_weight=float(weight) / float(b),
    )

    def in_index(p, i, L=tiles_per_part):
        return (p * L + i, 0)

    partials = pl.pallas_call(
        kernel,
        out_shape=jax.ShapeDtypeStruct((num_parts, 1), jnp.float32),
        grid=(num_parts, tiles_per_part),
        in_specs=[pl.BlockSpec((tn, hw_pad), in_index)],
        out_specs=pl.BlockSpec((1, 1), lambda p, i: (p, 0),
                               memory_space=pltpu.SMEM),
        scratch_shapes=[pltpu.VMEM((8, hw_pad), jnp.float32),
                        pltpu.VMEM((8, hw_pad), jnp.float32)],
        compiler_params=pltpu.CompilerParams(
            # Leading axis: independent partitions (2 TCs on v7x; serial and
            # essentially free elsewhere).  Trailing axis carries the VMEM
            # accumulators, so it must stay "arbitrary".
            dimension_semantics=("parallel", "arbitrary"),
            vmem_limit_bytes=32 * 1024 * 1024,
        ),
        cost_estimate=pl.CostEstimate(
            flops=6 * n_pad * hw_pad,
            transcendentals=0,
            bytes_accessed=n_pad * hw_pad * itemsize + num_parts * 4,
        ),
    )(x2)
    return jnp.sum(partials)


def _tv_loss_ref(x, weight: float = 1.0):
    """Pure-JAX reference for correctness checks."""
    x = x.astype(jnp.float32)
    b, c, h, w = x.shape
    count_h = c * (h - 1) * w
    count_w = c * h * (w - 1)
    h_tv = jnp.sum((x[:, :, 1:, :] - x[:, :, :-1, :]) ** 2)
    w_tv = jnp.sum((x[:, :, :, 1:] - x[:, :, :, :-1]) ** 2)
    return weight * (h_tv / count_h + w_tv / count_w) / b


if __name__ == "__main__":
    key = jax.random.PRNGKey(0)
    k1, k2, k3 = jax.random.split(key, 3)

    # Primary case: small NCHW input consistent with the module's usage.
    x = jax.random.normal(k1, (2, 4, 16, 16), dtype=jnp.float32)
    out = jax.block_until_ready(tv_loss(x, weight=1.0))
    ref = _tv_loss_ref(x, weight=1.0)
    assert jnp.allclose(out, ref, rtol=1e-5, atol=1e-5), (out, ref)

    # Rectangular H != W with H*W not a multiple of 128 (exercises lane
    # padding and guards against swapped row_stride / roll-direction bugs).
    xr = jax.random.normal(k2, (2, 3, 8, 20), dtype=jnp.float32)
    out_r = jax.block_until_ready(tv_loss(xr, weight=0.5))
    ref_r = _tv_loss_ref(xr, weight=0.5)
    assert jnp.allclose(out_r, ref_r, rtol=1e-5, atol=1e-5), (out_r, ref_r)

    # Larger B*C so the row tiles split across the two-partition parallel axis.
    xl = jax.random.normal(k3, (4, 32, 16, 16), dtype=jnp.float32)
    out_l = jax.block_until_ready(tv_loss(xl, weight=2.0))
    ref_l = _tv_loss_ref(xl, weight=2.0)
    assert jnp.allclose(out_l, ref_l, rtol=1e-5, atol=1e-5), (out_l, ref_l)

    print("KERNEL_OK")
</pallas_src>

<mosaic_0001>
module attributes {stable_mosaic.version = 11 : i64} {
  func.func @_tv_loss_kernel(%arg0: i32, %arg1: i32, %arg2: memref<32x256xf32, #tpu.memory_space<vmem>>, %arg3: memref<1x1xf32, #tpu.memory_space<smem>>, %arg4: memref<8x256xf32, #tpu.memory_space<vmem>>, %arg5: memref<8x256xf32, #tpu.memory_space<vmem>>) attributes {dimension_semantics = [#tpu.dimension_semantics<parallel>, #tpu.dimension_semantics<arbitrary>], iteration_bounds = array<i64: 1, 1>, scalar_prefetch = 0 : i64, scratch_operands = 2 : i64, tpu.core_type = #tpu.core_type<tc>, window_params = [{transform_indices = @transform_0, window_bounds = array<i64: 32, 256>}, {transform_indices = @transform_1, window_bounds = array<i64: 1, 1>}]} {
    %c0_i32 = arith.constant 0 : i32
    %0 = arith.cmpi eq, %arg1, %c0_i32 : i32
    %1 = arith.extui %0 : i1 to i32
    %c0_i32_0 = arith.constant 0 : i32
    %2 = arith.cmpi ne, %1, %c0_i32_0 : i32
    scf.if %2 {
      %cst_13 = arith.constant 0.000000e+00 : f32
      %23 = vector.broadcast %cst_13 : f32 to vector<8x256xf32>
      %c0_14 = arith.constant 0 : index
      %c0_15 = arith.constant 0 : index
      %24 = vector.load %arg4[%c0_14, %c0_15] : memref<8x256xf32, #tpu.memory_space<vmem>>, vector<8x256xf32>
      tpu.vector_store %arg4[%c0_14, %c0_15], %23 {strides = array<i32>} : memref<8x256xf32, #tpu.memory_space<vmem>>, vector<8x256xf32>,
      %cst_16 = arith.constant 0.000000e+00 : f32
      %25 = vector.broadcast %cst_16 : f32 to vector<8x256xf32>
      %c0_17 = arith.constant 0 : index
      %c0_18 = arith.constant 0 : index
      %26 = vector.load %arg5[%c0_17, %c0_18] : memref<8x256xf32, #tpu.memory_space<vmem>>, vector<8x256xf32>
      tpu.vector_store %arg5[%c0_17, %c0_18], %25 {strides = array<i32>} : memref<8x256xf32, #tpu.memory_space<vmem>>, vector<8x256xf32>,
    } else {
    }
    %c0 = arith.constant 0 : index
    %c0_1 = arith.constant 0 : index
    %3 = vector.load %arg2[%c0, %c0_1] : memref<32x256xf32, #tpu.memory_space<vmem>>, vector<32x256xf32>
    %c240_i32 = arith.constant 240 : i32
    %4 = tpu.dynamic_rotate %3 by %c240_i32 dim 1 : vector<32x256xf32>, i32 -> vector<32x256xf32>
    %c255_i32 = arith.constant 255 : i32
    %5 = tpu.dynamic_rotate %3 by %c255_i32 dim 1 : vector<32x256xf32>, i32 -> vector<32x256xf32>
    %6 = arith.subf %4, %3 : vector<32x256xf32>
    %7 = arith.subf %5, %3 : vector<32x256xf32>
    %c0_2 = arith.constant 0 : index
    %c0_3 = arith.constant 0 : index
    %8 = vector.load %arg4[%c0_2, %c0_3] : memref<8x256xf32, #tpu.memory_space<vmem>>, vector<8x256xf32>
    %9 = arith.mulf %6, %6 : vector<32x256xf32>
    %10 = vector.shape_cast %9 : vector<32x256xf32> to vector<4x8x256xf32>
    %cst = arith.constant dense<0.000000e+00> : vector<8x256xf32>
    %11 = vector.multi_reduction <add>, %10, %cst [0] : vector<4x8x256xf32> to vector<8x256xf32>
    %12 = arith.addf %8, %11 : vector<8x256xf32>
    %c0_4 = arith.constant 0 : index
    %c0_5 = arith.constant 0 : index
    %13 = vector.load %arg4[%c0_4, %c0_5] : memref<8x256xf32, #tpu.memory_space<vmem>>, vector<8x256xf32>
    tpu.vector_store %arg4[%c0_4, %c0_5], %12 {strides = array<i32>} : memref<8x256xf32, #tpu.memory_space<vmem>>, vector<8x256xf32>,
    %c0_6 = arith.constant 0 : index
    %c0_7 = arith.constant 0 : index
    %14 = vector.load %arg5[%c0_6, %c0_7] : memref<8x256xf32, #tpu.memory_space<vmem>>, vector<8x256xf32>
    %15 = arith.mulf %7, %7 : vector<32x256xf32>
    %16 = vector.shape_cast %15 : vector<32x256xf32> to vector<4x8x256xf32>
    %cst_8 = arith.constant dense<0.000000e+00> : vector<8x256xf32>
    %17 = vector.multi_reduction <add>, %16, %cst_8 [0] : vector<4x8x256xf32> to vector<8x256xf32>
    %18 = arith.addf %14, %17 : vector<8x256xf32>
    %c0_9 = arith.constant 0 : index
    %c0_10 = arith.constant 0 : index
    %19 = vector.load %arg5[%c0_9, %c0_10] : memref<8x256xf32, #tpu.memory_space<vmem>>, vector<8x256xf32>
    tpu.vector_store %arg5[%c0_9, %c0_10], %18 {strides = array<i32>} : memref<8x256xf32, #tpu.memory_space<vmem>>, vector<8x256xf32>,
    %c0_i32_11 = arith.constant 0 : i32
    %20 = arith.cmpi eq, %arg1, %c0_i32_11 : i32
    %21 = arith.extui %20 : i1 to i32
    %c0_i32_12 = arith.constant 0 : i32
    %22 = arith.cmpi ne, %21, %c0_i32_12 : i32
    scf.if %22 {
      %23 = tpu.iota {dimensions = array<i32: 1>} : vector<8x256xi32>
      %c240_i32_13 = arith.constant 240 : i32
      %24 = vector.broadcast %c240_i32_13 : i32 to vector<8x256xi32>
      %25 = arith.cmpi slt, %23, %24 : vector<8x256xi32>
      %26 = arith.extui %25 : vector<8x256xi1> to vector<8x256xi32>
      %27 = arith.sitofp %26 : vector<8x256xi32> to vector<8x256xf32>
      %c16_i32 = arith.constant 16 : i32
      %c0_i32_14 = arith.constant 0 : i32
      %28 = arith.cmpi eq, %c16_i32, %c0_i32_14 : i32
      %c1_i32 = arith.constant 1 : i32
      %29 = arith.select %28, %c1_i32, %c16_i32 : i32
      %30 = vector.broadcast %29 : i32 to vector<8x256xi32>
      %31 = arith.remsi %23, %30 : vector<8x256xi32>
      %c0_i32_15 = arith.constant 0 : i32
      %32 = vector.broadcast %c0_i32_15 : i32 to vector<8x256xi32>
      %33 = arith.cmpi ne, %31, %32 : vector<8x256xi32>
      %c0_i32_16 = arith.constant 0 : i32
      %34 = vector.broadcast %c0_i32_16 : i32 to vector<8x256xi32>
      %35 = arith.cmpi slt, %31, %34 : vector<8x256xi32>
      %c0_i32_17 = arith.constant 0 : i32
      %36 = arith.cmpi slt, %29, %c0_i32_17 : i32
      %37 = vector.broadcast %36 : i1 to vector<8x256xi1>
      %38 = vector.broadcast %37 : vector<8x256xi1> to vector<8x256xi1>
      %39 = arith.xori %35, %38 : vector<8x256xi1>
      %40 = arith.andi %39, %33 : vector<8x256xi1>
      %41 = vector.broadcast %29 : i32 to vector<8x256xi32>
      %42 = arith.addi %31, %41 : vector<8x256xi32>
      %43 = arith.select %40, %42, %31 : vector<8x256xi1>, vector<8x256xi32>
      %c15_i32 = arith.constant 15 : i32
      %44 = vector.broadcast %c15_i32 : i32 to vector<8x256xi32>
      %45 = arith.cmpi slt, %43, %44 : vector<8x256xi32>
      %c256_i32 = arith.constant 256 : i32
      %46 = vector.broadcast %c256_i32 : i32 to vector<8x256xi32>
      %47 = arith.cmpi slt, %23, %46 : vector<8x256xi32>
      %48 = arith.andi %45, %47 : vector<8x256xi1>
      %49 = arith.extui %48 : vector<8x256xi1> to vector<8x256xi32>
      %50 = arith.sitofp %49 : vector<8x256xi32> to vector<8x256xf32>
      %c0_18 = arith.constant 0 : index
      %c0_19 = arith.constant 0 : index
      %51 = vector.load %arg4[%c0_18, %c0_19] : memref<8x256xf32, #tpu.memory_space<vmem>>, vector<8x256xf32>
      %52 = arith.mulf %51, %27 : vector<8x256xf32>
      %53 = vector.shape_cast %52 : vector<8x256xf32> to vector<1x8x256xf32>
      %cst_20 = arith.constant dense<0.000000e+00> : vector<1xf32>
      %54 = vector.multi_reduction <add>, %53, %cst_20 [1, 2] : vector<1x8x256xf32> to vector<1xf32>
      %55 = vector.shape_cast %54 : vector<1xf32> to vector<1x1x1xf32>
      %56 = vector.extract %55[0, 0, 0] : f32 from vector<1x1x1xf32>
      %c0_21 = arith.constant 0 : index
      %c0_22 = arith.constant 0 : index
      %57 = vector.load %arg5[%c0_21, %c0_22] : memref<8x256xf32, #tpu.memory_space<vmem>>, vector<8x256xf32>
      %58 = arith.mulf %57, %50 : vector<8x256xf32>
      %59 = vector.shape_cast %58 : vector<8x256xf32> to vector<1x8x256xf32>
      %cst_23 = arith.constant dense<0.000000e+00> : vector<1xf32>
      %60 = vector.multi_reduction <add>, %59, %cst_23 [1, 2] : vector<1x8x256xf32> to vector<1xf32>
      %61 = vector.shape_cast %60 : vector<1xf32> to vector<1x1x1xf32>
      %62 = vector.extract %61[0, 0, 0] : f32 from vector<1x1x1xf32>
      %cst_24 = arith.constant 0.00104166672 : f32
      %63 = arith.mulf %56, %cst_24 : f32
      %cst_25 = arith.constant 0.00104166672 : f32
      %64 = arith.mulf %62, %cst_25 : f32
      %65 = arith.addf %63, %64 : f32
      %cst_26 = arith.constant 5.000000e-01 : f32
      %66 = arith.mulf %cst_26, %65 : f32
      %c0_27 = arith.constant 0 : index
      %c0_28 = arith.constant 0 : index
      %67 = memref.load %arg3[%c0_27, %c0_28] : memref<1x1xf32, #tpu.memory_space<smem>>
      memref.store %66, %arg3[%c0_27, %c0_28] : memref<1x1xf32, #tpu.memory_space<smem>>
    } else {
    }
    return
  }
  func.func @transform_0(%arg0: i32, %arg1: i32) -> (i32, i32) {
    %c1_i32 = arith.constant 1 : i32
    %0 = arith.muli %arg0, %c1_i32 : i32
    %1 = arith.addi %0, %arg1 : i32
    %c0_i32 = arith.constant 0 : i32
    %c0_i32_0 = arith.constant 0 : i32
    return %1, %c0_i32 : i32, i32
  }
  func.func @transform_1(%arg0: i32, %arg1: i32) -> (i32, i32) {
    %c0_i32 = arith.constant 0 : i32
    %c0_i32_0 = arith.constant 0 : i32
    return %arg0, %c0_i32 : i32, i32
  }
}

</mosaic_0001>

<llo_original>
// kernel: tpu_custom_call.1
$region0: #{tpu_custom_call.1}
  #allocation0 [shape = 'u32[]', space=smem, size = 0x4, offset = 0x4, fixed_abs, tag = 'smem constant byte address 0x4 - core index']
  #allocation1 [shape = 'u32[144,128]{1,0:T(1,128)}', space=vmem, size = 0x12000, scoped, tag = 'internal scratch']
  #allocation2 [shape = 'f32[8,256]{1,0:T(8,128)}', space=vmem, size = 0x2000, scoped, tag = 'scratch operand']
  #allocation3 [shape = 'f32[8,256]{1,0:T(8,128)}', space=vmem, size = 0x2000, scoped, tag = 'scratch operand']
  %s0 = inlined_call_operand.hbm [shape: f32[32,256], index: 0, kind: input, shape index: {}]
  %s1 = inlined_call_operand.hbm [shape: f32[1,1], index: 1, kind: output, shape index: {}]
  %s2 = sld [smem:[#allocation0]]
  $region26: #{tpu_custom_call.1} parent=0
    _
  %s4 = ssub.s32 1, %s2
  %s5 = scalar_select 0, %s4, %s2
  $region1: #{tpu_custom_call.1} parent=0
    #allocation4 [shape = 'u8[32768]{0}', space=vmem, size = 0x8000, scoped, tag = 'input window, operand 0, single buffered']
    #allocation5 [shape = 's32[1]{0}', space=sflag, size = 0x4, scoped, tag = 'scoped memory for tpu_custom_call.1']
    #allocation6 [shape = 's32[1]{0}', space=sflag, size = 0x4, scoped, tag = 'scoped memory for tpu_custom_call.1']
    #allocation7 [shape = 'u8[512]{0}', space=smem, size = 0x200, scoped, tag = 'output window, operand 0, single buffered']
    %6 = vsyncpa [#allocation5], 0
    %7 = vsyncpa [#allocation6], 0
    // Predicated region
    $region2: #{tpu_custom_call.1} parent=1 // pred_check
      _
    $region3: #{tpu_custom_call.1} parent=1 // pred_check_branch
      %9 = sbr.rel (0) target = $region5
    $region4: #{tpu_custom_call.1} parent=1 // pred_region
      %s10 = sadd.s32 0, 0
      %s11 = smul.u32 4, %s10
      %s13 = ssub.s32 1024, 1024
      %14 = vsyncadd [#allocation5], %s13
      %s15 = smul.addr %s11, 2
      %s16 = smul.addr %s15, 128
      %s17 = scalar_lea.hbm %s0, %s16
      %s18 = sshll.u32 [#allocation4], 4
      %s19 = int_to_ptr.vmem [resolvable:$true] %s18
      %24 = dma.hbm_to_vmem [thread:$0]  %s17, 1024, %s19, [#allocation5], 256, 256, 16
    $region5: #{tpu_custom_call.1} parent=1 // pred_fallthru
      _
    // Predicated region
    $region6: #{tpu_custom_call.1} parent=1 // pred_check
      _
    $region7: #{tpu_custom_call.1} parent=1 // pred_check_branch
      %26 = sbr.rel (0) target = $region9
    $region8: #{tpu_custom_call.1} parent=1 // pred_region
      %27 = dma.done [#allocation5], 1024
    $region9: #{tpu_custom_call.1} parent=1 // pred_fallthru
      _
    %s28 = sadd.s32 0, 0
    %s29 = smul.u32 4, %s28
    %p30 = scmp.eq.s32.totalorder 0, 0
    // Predicated region
    $region10: #{tpu_custom_call.1} parent=1 // pred_check
      %p31 = pneg %p30
    $region11: #{tpu_custom_call.1} parent=1 // pred_check_branch
      %33 = sbr.rel (%p31) target = $region13
    $region12: #{tpu_custom_call.1} parent=1 // pred_region
      %34 = vst [vmem:[#allocation2] sm:$0xff] 0.0
      %35 = vst [vmem:[#allocation2 + $0x8] sm:$0xff] 0.0
      %36 = vst [vmem:[#allocation3] sm:$0xff] 0.0
      %37 = vst [vmem:[#allocation3 + $0x8] sm:$0xff] 0.0
    $region13: #{tpu_custom_call.1} parent=1 // pred_fallthru
      _
    %v38 = vld [vmem:[#allocation4] sm:$0xff]
    %v39 = vld [vmem:[#allocation4 + $0x8] sm:$0xff]
    %v40 = vld [vmem:[#allocation4 + $0x10] sm:$0xff]
    %v41 = vld [vmem:[#allocation4 + $0x18] sm:$0xff]
    %v42 = vld [vmem:[#allocation4 + $0x20] sm:$0xff]
    %v43 = vld [vmem:[#allocation4 + $0x28] sm:$0xff]
    %v44 = vld [vmem:[#allocation4 + $0x30] sm:$0xff]
    %v45 = vld [vmem:[#allocation4 + $0x38] sm:$0xff]
    %46 = vrot.lane.b32.xlu0 %v38, 112
    %v47 = vpop.permute.xlu0 %46
    %48 = vrot.lane.b32.xlu0 %v40, 112
    %v49 = vpop.permute.xlu0 %48
    %50 = vrot.lane.b32.xlu0 %v42, 112
    %v51 = vpop.permute.xlu0 %50
    %52 = vrot.lane.b32.xlu0 %v44, 112
    %v53 = vpop.permute.xlu0 %52
    %54 = vrot.lane.b32.xlu0 %v39, 112
    %v55 = vpop.permute.xlu0 %54
    %56 = vrot.lane.b32.xlu0 %v41, 112
    %v57 = vpop.permute.xlu0 %56
    %58 = vrot.lane.b32.xlu0 %v43, 112
    %v59 = vpop.permute.xlu0 %58
    %60 = vrot.lane.b32.xlu0 %v45, 112
    %v61 = vpop.permute.xlu0 %60
    %v62 = vlaneseq
    %v63 = vand.u32 %v62, 127
    %vm64 = vcmp.lt.s32.totalorder %v63, 112
    %v65 = vsel %vm64, %v47, %v55
    %v66 = vsel %vm64, %v49, %v57
    %v67 = vsel %vm64, %v51, %v59
    %v68 = vsel %vm64, %v53, %v61
    %v69 = vsel %vm64, %v55, %v47
    %v70 = vsel %vm64, %v57, %v49
    %v71 = vsel %vm64, %v59, %v51
    %v72 = vsel %vm64, %v61, %v53
    %73 = vrot.lane.b32.xlu0 %v38, 127
    %v74 = vpop.permute.xlu0 %73
    %75 = vrot.lane.b32.xlu0 %v40, 127
    %v76 = vpop.permute.xlu0 %75
    %77 = vrot.lane.b32.xlu0 %v42, 127
    %v78 = vpop.permute.xlu0 %77
    %79 = vrot.lane.b32.xlu0 %v44, 127
    %v80 = vpop.permute.xlu0 %79
    %81 = vrot.lane.b32.xlu0 %v39, 127
    %v82 = vpop.permute.xlu0 %81
    %83 = vrot.lane.b32.xlu0 %v41, 127
    %v84 = vpop.permute.xlu0 %83
    %85 = vrot.lane.b32.xlu0 %v43, 127
    %v86 = vpop.permute.xlu0 %85
    %87 = vrot.lane.b32.xlu0 %v45, 127
    %v88 = vpop.permute.xlu0 %87
    %vm89 = vcmp.lt.s32.totalorder %v63, 127
    %v90 = vsel %vm89, %v74, %v82
    %v91 = vsel %vm89, %v76, %v84
    %v92 = vsel %vm89, %v78, %v86
    %v93 = vsel %vm89, %v80, %v88
    %v94 = vsel %vm89, %v82, %v74
    %v95 = vsel %vm89, %v84, %v76
    %v96 = vsel %vm89, %v86, %v78
    %v97 = vsel %vm89, %v88, %v80
    %v98 = vsub.f32 %v65, %v38
    %v99 = vsub.f32 %v69, %v39
    %v100 = vsub.f32 %v66, %v40
    %v101 = vsub.f32 %v70, %v41
    %v102 = vsub.f32 %v67, %v42
    %v103 = vsub.f32 %v71, %v43
    %v104 = vsub.f32 %v68, %v44
    %v105 = vsub.f32 %v72, %v45
    %v106 = vsub.f32 %v90, %v38
    %v107 = vsub.f32 %v94, %v39
    %v108 = vsub.f32 %v91, %v40
    %v109 = vsub.f32 %v95, %v41
    %v110 = vsub.f32 %v92, %v42
    %v111 = vsub.f32 %v96, %v43
    %v112 = vsub.f32 %v93, %v44
    %v113 = vsub.f32 %v97, %v45
    %v114 = vld [vmem:[#allocation2] sm:$0xff]
    %v115 = vld [vmem:[#allocation2 + $0x8] sm:$0xff]
    %v116 = vmul.f32 %v98, %v98
    %v117 = vmul.f32 %v99, %v99
    %v118 = vmul.f32 %v100, %v100
    %v119 = vmul.f32 %v101, %v101
    %v120 = vmul.f32 %v102, %v102
    %v121 = vmul.f32 %v103, %v103
    %v122 = vmul.f32 %v104, %v104
    %v123 = vmul.f32 %v105, %v105
    %v124 = vadd.f32 %v116, %v118
    %v125 = vadd.f32 %v124, %v120
    %v126 = vadd.f32 %v125, %v122
    %v127 = vadd.f32 %v117, %v119
    %v128 = vadd.f32 %v127, %v121
    %v129 = vadd.f32 %v128, %v123
    %v130 = vadd.f32 %v114, %v126
    %v131 = vadd.f32 %v115, %v129
    %132 = vst [vmem:[#allocation2] sm:$0xff] %v130
    %133 = vst [vmem:[#allocation2 + $0x8] sm:$0xff] %v131
    %v134 = vld [vmem:[#allocation3] sm:$0xff]
    %v135 = vld [vmem:[#allocation3 + $0x8] sm:$0xff]
    %v136 = vmul.f32 %v106, %v106
    %v137 = vmul.f32 %v107, %v107
    %v138 = vmul.f32 %v108, %v108
    %v139 = vmul.f32 %v109, %v109
    %v140 = vmul.f32 %v110, %v110
    %v141 = vmul.f32 %v111, %v111
    %v142 = vmul.f32 %v112, %v112
    %v143 = vmul.f32 %v113, %v113
    %v144 = vadd.f32 %v136, %v138
    %v145 = vadd.f32 %v144, %v140
    %v146 = vadd.f32 %v145, %v142
    %v147 = vadd.f32 %v137, %v139
    %v148 = vadd.f32 %v147, %v141
    %v149 = vadd.f32 %v148, %v143
    %v150 = vadd.f32 %v134, %v146
    %v151 = vadd.f32 %v135, %v149
    %152 = vst [vmem:[#allocation3] sm:$0xff] %v150
    %153 = vst [vmem:[#allocation3 + $0x8] sm:$0xff] %v151
    // Predicated region
    $region14: #{tpu_custom_call.1} parent=1 // pred_check
      %p154 = pneg %p30
    $region15: #{tpu_custom_call.1} parent=1 // pred_check_branch
      %156 = sbr.rel (%p154) target = $region17
    $region16: #{tpu_custom_call.1} parent=1 // pred_region
      %v157 = vadd.s32 %v63, 128
      %vm158 = vcmp.lt.s32.totalorder %v63, 240
      %vm159 = vcmp.lt.s32.totalorder %v157, 240
      %v160 = vsel %vm158, 1, 0
      %v161 = vsel %vm159, 1, 0
      %v162 = vcvt.s32.f32 %v160
      %v163 = vcvt.s32.f32 %v161
      %vm164 = vcmp.lt.s32.totalorder %v63, 0
      %v165 = vsub.s32 0, %v63
      %v166 = vsel %vm164, %v165, %v63
      %v167 = vshrl.u32 %v166, 4
      %v168 = vand.u32 %v166, 15
      %v169 = vsub.s32 0, %v168
      %v170 = vsel %vm164, %v169, %v168
      %vm171 = vcmp.lt.s32.totalorder %v157, 0
      %v172 = vsub.s32 0, %v157
      %v173 = vsel %vm171, %v172, %v157
      %v174 = vshrl.u32 %v173, 4
      %v175 = vand.u32 %v173, 15
      %v176 = vsub.s32 0, %v175
      %v177 = vsel %vm171, %v176, %v175
      %vm178 = vcmp.ne.s32.totalorder %v170, 0
      %vm179 = vcmp.ne.s32.totalorder %v177, 0
      %vm180 = vcmp.lt.s32.totalorder %v170, 0
      %vm181 = vcmp.lt.s32.totalorder %v177, 0
      %vm182 = vmand %vm180, %vm178
      %vm183 = vmand %vm181, %vm179
      %v184 = vadd.s32 %v170, 16
      %v185 = vadd.s32 %v177, 16
      %v186 = vsel %vm182, %v184, %v170
      %v187 = vsel %vm183, %v185, %v177
      %vm188 = vcmp.lt.s32.totalorder %v186, 15
      %vm189 = vcmp.lt.s32.totalorder %v187, 15
      %vm190 = vcmp.lt.s32.totalorder %v63, 256
      %vm191 = vcmp.lt.s32.totalorder %v157, 256
      %vm192 = vmand %vm188, %vm190
      %vm193 = vmand %vm189, %vm191
      %v194 = vsel %vm192, 1, 0
      %v195 = vsel %vm193, 1, 0
      %v196 = vcvt.s32.f32 %v194
      %v197 = vcvt.s32.f32 %v195
      %v198 = vld [vmem:[#allocation2] sm:$0xff]
      %v199 = vld [vmem:[#allocation2 + $0x8] sm:$0xff]
      %v200 = vmul.f32 %v198, %v162
      %v201 = vmul.f32 %v199, %v163
      %v202 = vadd.f32 %v200, %v201
      %203 = vadd.xlane.f32.xlu0 %v202
      %v204 = vpop.xlane.xlu0 %203
      %v205 = vrot.slane %v204, 4
      %v206 = vadd.f32 %v204, %v205
      %v207 = vrot.slane %v206, 2
      %v208 = vadd.f32 %v206, %v207
      %v209 = vrot.slane %v208, 1
      %v210 = vadd.f32 %v208, %v209
      %s211 = vtos %v210
      %v212 = vld [vmem:[#allocation3] sm:$0xff]
      %v213 = vld [vmem:[#allocation3 + $0x8] sm:$0xff]
      %v214 = vmul.f32 %v212, %v196
      %v215 = vmul.f32 %v213, %v197
      %v216 = vadd.f32 %v214, %v215
      %217 = vadd.xlane.f32.xlu0 %v216
      %v218 = vpop.xlane.xlu0 %217
      %v219 = vrot.slane %v218, 4
      %v220 = vadd.f32 %v218, %v219
      %v221 = vrot.slane %v220, 2
      %v222 = vadd.f32 %v220, %v221
      %v223 = vrot.slane %v222, 1
      %v224 = vadd.f32 %v222, %v223
      %s225 = vtos %v224
      %s226 = smul.f32 %s211, 0.0010416667
      %s227 = smul.f32 %s225, 0.0010416667
      %s228 = sadd.f32 %s226, %s227
      %s229 = smul.f32 %s228, 0.5
      %s230 = scalar_lea.smem [#allocation7], 0
      %231 = sst [smem:[%s230]] %s229
    $region17: #{tpu_custom_call.1} parent=1 // pred_fallthru
      _
    // Predicated region
    $region18: #{tpu_custom_call.1} parent=1 // pred_check
      _
    $region19: #{tpu_custom_call.1} parent=1 // pred_check_branch
      %233 = sbr.rel (0) target = $region21
    $region20: #{tpu_custom_call.1} parent=1 // pred_region
      %s235 = ssub.s32 16, 16
      %236 = vsyncadd [#allocation6], %s235
      %239 = dma.smem_to_hbm [#allocation7], 16, %s1, [#allocation6]
    $region21: #{tpu_custom_call.1} parent=1 // pred_fallthru
      _
    // Predicated region
    $region22: #{tpu_custom_call.1} parent=1 // pred_check
      _
    $region23: #{tpu_custom_call.1} parent=1 // pred_check_branch
      %241 = sbr.rel (0) target = $region25
    $region24: #{tpu_custom_call.1} parent=1 // pred_region
      %242 = dma.done [#allocation6], 16
    $region25: #{tpu_custom_call.1} parent=1 // pred_fallthru
      _
    %243 = sfence
    %244 = vsyncpa [#allocation5], 1
    %245 = vsyncpa [#allocation6], 1

</llo_original>
